<compile_context>
chip_gen: v5e
topology: v5e:2x2
jax: 0.10.0
libtpu: 0.0.40
codegen_flags: <defaults>
</compile_context>

<pallas_src>
import functools

import jax
import jax.numpy as jnp
from jax.experimental import pallas as pl
from jax.experimental.pallas import tpu as pltpu


def _round_up(x, m):
    return (x + m - 1) // m * m


def _temporal_conv_kernel(x_ref, w_ref, b_ref, o_ref, xcat_ref, *,
                          Kt, T_out, c_pad, c_out, c_outp, act_func, mxu_dtype):
    """One grid step = (batch tile) x (vertex tile).

    x_ref   : (Bb, T, c_pad, Vt)       temporal taps are free leading-axis views
    w_ref   : (n_rows, Kt*c_pad)       im2col-folded conv weight (rows padded to x8)
    b_ref   : (n_rows, 1)              f32 bias (same row padding)
    o_ref   : (Bb, T_out, c_out, Vt)   lane-dense output tiles
    xcat_ref: (Kt*c_pad, Bb*T_out*Vt)  VMEM im2col scratch (input dtype)
    """
    Bb = x_ref.shape[0]
    Vt = x_ref.shape[-1]

    # (1) im2col assembly into the VMEM scratch.  Every source and destination is
    #     sublane-(8) and lane-(128) aligned, so these are plain vld/vst slab moves
    #     (no cross-lane relayouts) that overlap the MXU work of neighboring steps.
    for bb in range(Bb):
        for t in range(T_out):
            col = (bb * T_out + t) * Vt
            for k in range(Kt):
                xcat_ref[k * c_pad:(k + 1) * c_pad, col:col + Vt] = x_ref[bb, t + k]

    # (2) a single MXU contraction for the whole (batch x time x vertex) tile.
    lhs = w_ref[...]
    rhs = xcat_ref[...]
    if mxu_dtype is not None:
        rhs = rhs.astype(mxu_dtype)          # weights were already cast in the wrapper
    acc = jnp.dot(lhs, rhs, preferred_element_type=jnp.float32)
    acc = acc + b_ref[...]                   # one bias broadcast per grid step

    # (3) Align residual: the rows of the LAST tap inside the im2col scratch are
    #     exactly x[:, t+Kt-1, :c_out] with the Align channel zero-padding already
    #     applied by the wrapper -> free, non-quantized (input-dtype) slice.
    last = (Kt - 1) * c_pad
    x_in = xcat_ref[last:last + c_out, :].astype(jnp.float32)

    if act_func == "glu":
        out = (acc[:c_out] + x_in) * jax.nn.sigmoid(acc[c_outp:c_outp + c_out])
    elif act_func == "gtu":
        out = jnp.tanh(acc[:c_out] + x_in) * jax.nn.sigmoid(acc[c_outp:c_outp + c_out])
    elif act_func == "relu":
        out = jnp.maximum(acc[:c_out] + x_in, 0.0)
    elif act_func == "silu":
        z = acc[:c_out] + x_in
        out = z * jax.nn.sigmoid(z)
    else:
        raise NotImplementedError(act_func)
    out = out.astype(o_ref.dtype)            # one wide cast

    # (4) lane-dense stores: one full (c_out, Vt) tile per (batch, time) position.
    for bb in range(Bb):
        for t in range(T_out):
            col = (bb * T_out + t) * Vt
            o_ref[bb, t] = out[:, col:col + Vt]


def temporal_conv_layer(x_nchw, weight, bias, *, Kt, c_in, c_out, act_func="glu",
                        mxu_dtype=None, block_batch=None, block_v=None):
    """STGCN TemporalConvLayer forward.

    x_nchw : (B, c_in, T, V)           PyTorch NCHW convention.
    weight : (n_conv_out, c_in, Kt, 1) PyTorch Conv2d weight.
    bias   : (n_conv_out,)
    returns: (B, c_out, T_out, V) with T_out = T - Kt + 1.

    mxu_dtype: optionally jnp.bfloat16 — casts ONLY the MXU operands (weights and the
        im2col RHS); accumulation, bias, activation math and the Align residual stay
        in f32 / input dtype, so the residual path matches the f32 module exactly.
        Default None keeps a fully exact f32 MXU path.
    """
    B, C, T, V = x_nchw.shape
    assert C == c_in
    assert T >= Kt
    T_out = T - Kt + 1
    assert c_in <= c_out, "c_in > c_out Align (1x1 conv) path not implemented here"
    # TODO(synk): c_in > c_out Align path (1x1 conv) not wired into this kernel.

    is_gated = act_func in ("glu", "gtu")
    n_conv_out = 2 * c_out if is_gated else c_out
    assert weight.shape == (n_conv_out, c_in, Kt, 1), weight.shape

    in_dtype = x_nchw.dtype
    itm = jnp.dtype(in_dtype).itemsize
    w_dtype = mxu_dtype if mxu_dtype is not None else in_dtype
    w_itm = jnp.dtype(w_dtype).itemsize

    # Channel padding: covers Align zero-padding to c_out AND rounds the contraction
    # rows up to a sublane multiple of 8.  Gate rows are padded separately so the
    # P / Q slices inside the kernel stay sublane-aligned.
    c_pad = _round_up(max(c_in, c_out), 8)
    c_outp = _round_up(c_out, 8)
    n_rows = 2 * c_outp if is_gated else c_outp
    V_pad = _round_up(V, 128)

    # ---- generation-aware VMEM budget -------------------------------------------
    try:
        vmem_cap = int(getattr(pltpu.get_tpu_info(), "vmem_capacity_bytes", 64 << 20))
    except Exception:                 # conservative fallback: v7x-sized VMEM
        vmem_cap = 64 << 20
    budget = min(vmem_cap // 4, 48 << 20)   # v7x ~16 MiB, v5e/v6e ~32 MiB working set

    def ws_bytes(bb, vt):
        """Rough per-grid-step VMEM working set for block sizes (bb, vt)."""
        n_blk = bb * T_out * vt
        xb = 2 * bb * T * c_pad * vt * itm            # double-buffered input block
        ob = 2 * bb * T_out * c_out * vt * itm        # double-buffered output block
        wb = 2 * n_rows * (Kt * c_pad + 1) * w_itm    # weights + bias (double-buffered)
        sc = Kt * c_pad * n_blk * itm                 # im2col scratch
        if mxu_dtype is not None:
            sc += Kt * c_pad * n_blk * w_itm          # bf16 copy of the RHS at the dot
        acc = n_rows * n_blk * 4                      # f32 matmul result
        tmp = 3 * c_out * n_blk * 4                   # activation temporaries
        return xb + ob + wb + sc + acc + tmp

    # Vertex (lane) tile: largest multiple of 128 dividing V_pad that fits the budget.
    if block_v is None:
        Vt = 128
        for vt in range(min(V_pad, 2048), 0, -128):
            if V_pad % vt == 0 and ws_bytes(1, vt) <= budget:
                Vt = vt
                break
    else:
        Vt = block_v
    assert Vt % 128 == 0 and V_pad % Vt == 0, (Vt, V_pad)

    # Batch tile: amortize the ~0.35us per-grid-step overhead while fitting the budget
    # (cap at 8 only to bound the copy/store unroll), and keep >=2 grid steps when
    # B >= 2 so both v7x TensorCores get work even with a single vertex tile.
    if block_batch is None:
        Bb = 1
        for bb in range(min(B, 8), 0, -1):
            if ws_bytes(bb, Vt) <= budget:
                Bb = bb
                break
        if V_pad // Vt == 1 and B >= 2:
            Bb = min(Bb, int(pl.cdiv(B, 2)))
    else:
        Bb = block_batch

    # ---- operand layout (wrapper-side, one XLA pass each) ------------------------
    # NCHW -> (B, T, c_pad, V_pad): channels on sublanes, vertices on lanes, taps as
    # free leading-axis views inside the kernel.
    x = jnp.transpose(x_nchw, (0, 2, 1, 3))
    x = jnp.pad(x, ((0, 0), (0, 0), (0, c_pad - c_in), (0, V_pad - V)))

    # Conv weight (n_conv_out, c_in, Kt, 1) -> im2col layout (n_rows, Kt*c_pad) so
    # that w[o, k*c_pad + c] pairs with xcat[k*c_pad + c, :] = x[c, time shifted by k].
    w = jnp.transpose(weight[:, :, :, 0], (0, 2, 1))            # (n_conv_out, Kt, c_in)
    w = jnp.pad(w, ((0, 0), (0, 0), (0, c_pad - c_in)))
    w = w.reshape(n_conv_out, Kt * c_pad)
    b = bias.reshape(n_conv_out).astype(jnp.float32)
    if is_gated:
        w = jnp.concatenate(
            [jnp.pad(w[:c_out], ((0, c_outp - c_out), (0, 0))),
             jnp.pad(w[c_out:], ((0, c_outp - c_out), (0, 0)))], axis=0)
        b = jnp.concatenate(
            [jnp.pad(b[:c_out], (0, c_outp - c_out)),
             jnp.pad(b[c_out:], (0, c_outp - c_out))], axis=0)
    else:
        w = jnp.pad(w, ((0, c_outp - c_out), (0, 0)))
        b = jnp.pad(b, (0, c_outp - c_out))
    w = w.astype(w_dtype)
    b = b.reshape(n_rows, 1)

    grid = (int(pl.cdiv(B, Bb)), V_pad // Vt)

    kernel = functools.partial(
        _temporal_conv_kernel, Kt=Kt, T_out=T_out, c_pad=c_pad, c_out=c_out,
        c_outp=c_outp, act_func=act_func, mxu_dtype=mxu_dtype)

    flops = int(2 * B * T_out * V_pad * n_rows * (Kt * c_pad))
    transc_per = {"glu": 1, "silu": 1, "gtu": 2, "relu": 0}[act_func]
    transcendentals = int(transc_per * B * T_out * V * c_out)
    bytes_accessed = int(x.size * itm + w.size * w_itm + n_rows * 4
                         + B * T_out * c_out * V_pad * itm)

    est = ws_bytes(Bb, Vt)
    vmem_limit = int(min(max(32 << 20, est * 5 // 4 + (4 << 20)),
                         vmem_cap - (8 << 20)))

    out = pl.pallas_call(
        kernel,
        out_shape=jax.ShapeDtypeStruct((B, T_out, c_out, V_pad), in_dtype),
        grid_spec=pltpu.PrefetchScalarGridSpec(
            num_scalar_prefetch=0,
            grid=grid,
            in_specs=[
                pl.BlockSpec((Bb, T, c_pad, Vt), lambda i, j: (i, 0, 0, j)),
                pl.BlockSpec((n_rows, Kt * c_pad), lambda i, j: (0, 0)),
                pl.BlockSpec((n_rows, 1), lambda i, j: (0, 0)),
            ],
            out_specs=pl.BlockSpec((Bb, T_out, c_out, Vt), lambda i, j: (i, 0, 0, j)),
            scratch_shapes=[pltpu.VMEM((Kt * c_pad, Bb * T_out * Vt), in_dtype)],
        ),
        compiler_params=pltpu.CompilerParams(
            dimension_semantics=("parallel", "parallel"),
            vmem_limit_bytes=vmem_limit),
        cost_estimate=pl.CostEstimate(flops=flops,
                                      transcendentals=transcendentals,
                                      bytes_accessed=bytes_accessed),
    )(x, w, b)

    # (B, T_out, c_out, V_pad) -> NCHW (B, c_out, T_out, V).
    return jnp.transpose(out, (0, 2, 1, 3))[:, :, :, :V]


def _reference(x_nchw, weight, bias, *, Kt, c_in, c_out, act_func="glu"):
    """Pure-JAX reference mirroring the PyTorch module (NCHW)."""
    B, _, T, V = x_nchw.shape
    T_out = T - Kt + 1
    conv = jnp.zeros((B, weight.shape[0], T_out, V), jnp.float32)
    for k in range(Kt):
        conv = conv + jnp.einsum(
            "oc,bctv->botv", weight[:, :, k, 0], x_nchw[:, :, k:k + T_out, :])
    conv = conv + bias[None, :, None, None]

    x_in = x_nchw[:, :, Kt - 1:, :]
    if c_in < c_out:
        x_in = jnp.concatenate(
            [x_in, jnp.zeros((B, c_out - c_in, T_out, V), jnp.float32)], axis=1)

    if act_func == "glu":
        x_p, x_q = conv[:, :c_out], conv[:, c_out:]
        return (x_p + x_in) * jax.nn.sigmoid(x_q)
    if act_func == "gtu":
        x_p, x_q = conv[:, :c_out], conv[:, c_out:]
        return jnp.tanh(x_p + x_in) * jax.nn.sigmoid(x_q)
    if act_func == "relu":
        return jnp.maximum(conv + x_in, 0.0)
    if act_func == "silu":
        z = conv + x_in
        return z * jax.nn.sigmoid(z)
    raise NotImplementedError(act_func)


if __name__ == "__main__":
    def run_case(B, c_in, c_out, T, V, Kt, act_func, **kw):
        n_conv_out = 2 * c_out if act_func in ("glu", "gtu") else c_out
        key = jax.random.PRNGKey(0)
        kx, kw_, kb = jax.random.split(key, 3)
        x = jax.random.normal(kx, (B, c_in, T, V), dtype=jnp.float32)
        fan_in = c_in * Kt
        bound = 1.0 / (fan_in ** 0.5)
        weight = jax.random.uniform(kw_, (n_conv_out, c_in, Kt, 1),
                                    minval=-bound, maxval=bound, dtype=jnp.float32)
        bias = jax.random.uniform(kb, (n_conv_out,),
                                  minval=-bound, maxval=bound, dtype=jnp.float32)

        out = temporal_conv_layer(x, weight, bias, Kt=Kt, c_in=c_in, c_out=c_out,
                                  act_func=act_func, **kw)
        out = jax.block_until_ready(out)

        ref = _reference(x, weight, bias, Kt=Kt, c_in=c_in, c_out=c_out,
                         act_func=act_func)
        assert out.shape == (B, c_out, T - Kt + 1, V), out.shape
        assert out.dtype == jnp.float32
        err = float(jnp.max(jnp.abs(out - ref)))
        assert jnp.allclose(out, ref, rtol=1e-5, atol=1e-5), err

    # Primary case: module defaults (GLU gating), small shapes.
    run_case(B=2, c_in=4, c_out=8, T=8, V=16, Kt=3, act_func="glu")
    # Secondary case: exercises the vertex-tiled grid axis (2 lane tiles), a ragged
    # batch tail (B % Bb != 0, OOB writes dropped) and the non-gated activation path.
    run_case(B=3, c_in=4, c_out=8, T=10, V=200, Kt=3, act_func="relu",
             block_batch=2, block_v=128)

    print("KERNEL_OK")
</pallas_src>

<mosaic_0001>
module attributes {stable_mosaic.version = 11 : i64} {
  func.func @_temporal_conv_kernel(%arg0: i32, %arg1: i32, %arg2: memref<1x8x8x128xf32, #tpu.memory_space<vmem>>, %arg3: memref<16x24xf32, #tpu.memory_space<vmem>>, %arg4: memref<16x1xf32, #tpu.memory_space<vmem>>, %arg5: memref<1x6x8x128xf32, #tpu.memory_space<vmem>>, %arg6: memref<24x768xf32, #tpu.memory_space<vmem>>) attributes {dimension_semantics = [#tpu.dimension_semantics<parallel>, #tpu.dimension_semantics<parallel>], iteration_bounds = array<i64: 2, 1>, scalar_prefetch = 0 : i64, scratch_operands = 1 : i64, tpu.core_type = #tpu.core_type<tc>, window_params = [{transform_indices = @transform_0, window_bounds = array<i64: 1, 8, 8, 128>}, {pipeline_mode = #tpu.pipeline_mode<synchronous>, transform_indices = @transform_1, window_bounds = array<i64: 16, 24>}, {pipeline_mode = #tpu.pipeline_mode<synchronous>, transform_indices = @transform_2, window_bounds = array<i64: 16, 1>}, {transform_indices = @transform_3, window_bounds = array<i64: 1, 6, 8, 128>}]} {
    %c0 = arith.constant 0 : index
    %c0_0 = arith.constant 0 : index
    %c0_1 = arith.constant 0 : index
    %c0_2 = arith.constant 0 : index
    %0 = vector.load %arg2[%c0, %c0_0, %c0_1, %c0_2] : memref<1x8x8x128xf32, #tpu.memory_space<vmem>>, vector<1x1x8x128xf32>
    %1 = vector.shape_cast %0 : vector<1x1x8x128xf32> to vector<8x128xf32>
    %c0_3 = arith.constant 0 : index
    %c0_4 = arith.constant 0 : index
    %2 = vector.load %arg6[%c0_3, %c0_4] : memref<24x768xf32, #tpu.memory_space<vmem>>, vector<8x128xf32>
    tpu.vector_store %arg6[%c0_3, %c0_4], %1 {strides = array<i32>} : memref<24x768xf32, #tpu.memory_space<vmem>>, vector<8x128xf32>,
    %c0_5 = arith.constant 0 : index
    %c1 = arith.constant 1 : index
    %c0_6 = arith.constant 0 : index
    %c0_7 = arith.constant 0 : index
    %3 = vector.load %arg2[%c0_5, %c1, %c0_6, %c0_7] : memref<1x8x8x128xf32, #tpu.memory_space<vmem>>, vector<1x1x8x128xf32>
    %4 = vector.shape_cast %3 : vector<1x1x8x128xf32> to vector<8x128xf32>
    %c8 = arith.constant 8 : index
    %c0_8 = arith.constant 0 : index
    %5 = vector.load %arg6[%c8, %c0_8] : memref<24x768xf32, #tpu.memory_space<vmem>>, vector<8x128xf32>
    tpu.vector_store %arg6[%c8, %c0_8], %4 {strides = array<i32>} : memref<24x768xf32, #tpu.memory_space<vmem>>, vector<8x128xf32>,
    %c0_9 = arith.constant 0 : index
    %c2 = arith.constant 2 : index
    %c0_10 = arith.constant 0 : index
    %c0_11 = arith.constant 0 : index
    %6 = vector.load %arg2[%c0_9, %c2, %c0_10, %c0_11] : memref<1x8x8x128xf32, #tpu.memory_space<vmem>>, vector<1x1x8x128xf32>
    %7 = vector.shape_cast %6 : vector<1x1x8x128xf32> to vector<8x128xf32>
    %c16 = arith.constant 16 : index
    %c0_12 = arith.constant 0 : index
    %8 = vector.load %arg6[%c16, %c0_12] : memref<24x768xf32, #tpu.memory_space<vmem>>, vector<8x128xf32>
    tpu.vector_store %arg6[%c16, %c0_12], %7 {strides = array<i32>} : memref<24x768xf32, #tpu.memory_space<vmem>>, vector<8x128xf32>,
    %c0_13 = arith.constant 0 : index
    %c1_14 = arith.constant 1 : index
    %c0_15 = arith.constant 0 : index
    %c0_16 = arith.constant 0 : index
    %9 = vector.load %arg2[%c0_13, %c1_14, %c0_15, %c0_16] : memref<1x8x8x128xf32, #tpu.memory_space<vmem>>, vector<1x1x8x128xf32>
    %10 = vector.shape_cast %9 : vector<1x1x8x128xf32> to vector<8x128xf32>
    %c0_17 = arith.constant 0 : index
    %c128 = arith.constant 128 : index
    %11 = vector.load %arg6[%c0_17, %c128] : memref<24x768xf32, #tpu.memory_space<vmem>>, vector<8x128xf32>
    tpu.vector_store %arg6[%c0_17, %c128], %10 {strides = array<i32>} : memref<24x768xf32, #tpu.memory_space<vmem>>, vector<8x128xf32>,
    %c0_18 = arith.constant 0 : index
    %c2_19 = arith.constant 2 : index
    %c0_20 = arith.constant 0 : index
    %c0_21 = arith.constant 0 : index
    %12 = vector.load %arg2[%c0_18, %c2_19, %c0_20, %c0_21] : memref<1x8x8x128xf32, #tpu.memory_space<vmem>>, vector<1x1x8x128xf32>
    %13 = vector.shape_cast %12 : vector<1x1x8x128xf32> to vector<8x128xf32>
    %c8_22 = arith.constant 8 : index
    %c128_23 = arith.constant 128 : index
    %14 = vector.load %arg6[%c8_22, %c128_23] : memref<24x768xf32, #tpu.memory_space<vmem>>, vector<8x128xf32>
    tpu.vector_store %arg6[%c8_22, %c128_23], %13 {strides = array<i32>} : memref<24x768xf32, #tpu.memory_space<vmem>>, vector<8x128xf32>,
    %c0_24 = arith.constant 0 : index
    %c3 = arith.constant 3 : index
    %c0_25 = arith.constant 0 : index
    %c0_26 = arith.constant 0 : index
    %15 = vector.load %arg2[%c0_24, %c3, %c0_25, %c0_26] : memref<1x8x8x128xf32, #tpu.memory_space<vmem>>, vector<1x1x8x128xf32>
    %16 = vector.shape_cast %15 : vector<1x1x8x128xf32> to vector<8x128xf32>
    %c16_27 = arith.constant 16 : index
    %c128_28 = arith.constant 128 : index
    %17 = vector.load %arg6[%c16_27, %c128_28] : memref<24x768xf32, #tpu.memory_space<vmem>>, vector<8x128xf32>
    tpu.vector_store %arg6[%c16_27, %c128_28], %16 {strides = array<i32>} : memref<24x768xf32, #tpu.memory_space<vmem>>, vector<8x128xf32>,
    %c0_29 = arith.constant 0 : index
    %c2_30 = arith.constant 2 : index
    %c0_31 = arith.constant 0 : index
    %c0_32 = arith.constant 0 : index
    %18 = vector.load %arg2[%c0_29, %c2_30, %c0_31, %c0_32] : memref<1x8x8x128xf32, #tpu.memory_space<vmem>>, vector<1x1x8x128xf32>
    %19 = vector.shape_cast %18 : vector<1x1x8x128xf32> to vector<8x128xf32>
    %c0_33 = arith.constant 0 : index
    %c256 = arith.constant 256 : index
    %20 = vector.load %arg6[%c0_33, %c256] : memref<24x768xf32, #tpu.memory_space<vmem>>, vector<8x128xf32>
    tpu.vector_store %arg6[%c0_33, %c256], %19 {strides = array<i32>} : memref<24x768xf32, #tpu.memory_space<vmem>>, vector<8x128xf32>,
    %c0_34 = arith.constant 0 : index
    %c3_35 = arith.constant 3 : index
    %c0_36 = arith.constant 0 : index
    %c0_37 = arith.constant 0 : index
    %21 = vector.load %arg2[%c0_34, %c3_35, %c0_36, %c0_37] : memref<1x8x8x128xf32, #tpu.memory_space<vmem>>, vector<1x1x8x128xf32>
    %22 = vector.shape_cast %21 : vector<1x1x8x128xf32> to vector<8x128xf32>
    %c8_38 = arith.constant 8 : index
    %c256_39 = arith.constant 256 : index
    %23 = vector.load %arg6[%c8_38, %c256_39] : memref<24x768xf32, #tpu.memory_space<vmem>>, vector<8x128xf32>
    tpu.vector_store %arg6[%c8_38, %c256_39], %22 {strides = array<i32>} : memref<24x768xf32, #tpu.memory_space<vmem>>, vector<8x128xf32>,
    %c0_40 = arith.constant 0 : index
    %c4 = arith.constant 4 : index
    %c0_41 = arith.constant 0 : index
    %c0_42 = arith.constant 0 : index
    %24 = vector.load %arg2[%c0_40, %c4, %c0_41, %c0_42] : memref<1x8x8x128xf32, #tpu.memory_space<vmem>>, vector<1x1x8x128xf32>
    %25 = vector.shape_cast %24 : vector<1x1x8x128xf32> to vector<8x128xf32>
    %c16_43 = arith.constant 16 : index
    %c256_44 = arith.constant 256 : index
    %26 = vector.load %arg6[%c16_43, %c256_44] : memref<24x768xf32, #tpu.memory_space<vmem>>, vector<8x128xf32>
    tpu.vector_store %arg6[%c16_43, %c256_44], %25 {strides = array<i32>} : memref<24x768xf32, #tpu.memory_space<vmem>>, vector<8x128xf32>,
    %c0_45 = arith.constant 0 : index
    %c3_46 = arith.constant 3 : index
    %c0_47 = arith.constant 0 : index
    %c0_48 = arith.constant 0 : index
    %27 = vector.load %arg2[%c0_45, %c3_46, %c0_47, %c0_48] : memref<1x8x8x128xf32, #tpu.memory_space<vmem>>, vector<1x1x8x128xf32>
    %28 = vector.shape_cast %27 : vector<1x1x8x128xf32> to vector<8x128xf32>
    %c0_49 = arith.constant 0 : index
    %c384 = arith.constant 384 : index
    %29 = vector.load %arg6[%c0_49, %c384] : memref<24x768xf32, #tpu.memory_space<vmem>>, vector<8x128xf32>
    tpu.vector_store %arg6[%c0_49, %c384], %28 {strides = array<i32>} : memref<24x768xf32, #tpu.memory_space<vmem>>, vector<8x128xf32>,
    %c0_50 = arith.constant 0 : index
    %c4_51 = arith.constant 4 : index
    %c0_52 = arith.constant 0 : index
    %c0_53 = arith.constant 0 : index
    %30 = vector.load %arg2[%c0_50, %c4_51, %c0_52, %c0_53] : memref<1x8x8x128xf32, #tpu.memory_space<vmem>>, vector<1x1x8x128xf32>
    %31 = vector.shape_cast %30 : vector<1x1x8x128xf32> to vector<8x128xf32>
    %c8_54 = arith.constant 8 : index
    %c384_55 = arith.constant 384 : index
    %32 = vector.load %arg6[%c8_54, %c384_55] : memref<24x768xf32, #tpu.memory_space<vmem>>, vector<8x128xf32>
    tpu.vector_store %arg6[%c8_54, %c384_55], %31 {strides = array<i32>} : memref<24x768xf32, #tpu.memory_space<vmem>>, vector<8x128xf32>,
    %c0_56 = arith.constant 0 : index
    %c5 = arith.constant 5 : index
    %c0_57 = arith.constant 0 : index
    %c0_58 = arith.constant 0 : index
    %33 = vector.load %arg2[%c0_56, %c5, %c0_57, %c0_58] : memref<1x8x8x128xf32, #tpu.memory_space<vmem>>, vector<1x1x8x128xf32>
    %34 = vector.shape_cast %33 : vector<1x1x8x128xf32> to vector<8x128xf32>
    %c16_59 = arith.constant 16 : index
    %c384_60 = arith.constant 384 : index
    %35 = vector.load %arg6[%c16_59, %c384_60] : memref<24x768xf32, #tpu.memory_space<vmem>>, vector<8x128xf32>
    tpu.vector_store %arg6[%c16_59, %c384_60], %34 {strides = array<i32>} : memref<24x768xf32, #tpu.memory_space<vmem>>, vector<8x128xf32>,
    %c0_61 = arith.constant 0 : index
    %c4_62 = arith.constant 4 : index
    %c0_63 = arith.constant 0 : index
    %c0_64 = arith.constant 0 : index
    %36 = vector.load %arg2[%c0_61, %c4_62, %c0_63, %c0_64] : memref<1x8x8x128xf32, #tpu.memory_space<vmem>>, vector<1x1x8x128xf32>
    %37 = vector.shape_cast %36 : vector<1x1x8x128xf32> to vector<8x128xf32>
    %c0_65 = arith.constant 0 : index
    %c512 = arith.constant 512 : index
    %38 = vector.load %arg6[%c0_65, %c512] : memref<24x768xf32, #tpu.memory_space<vmem>>, vector<8x128xf32>
    tpu.vector_store %arg6[%c0_65, %c512], %37 {strides = array<i32>} : memref<24x768xf32, #tpu.memory_space<vmem>>, vector<8x128xf32>,
    %c0_66 = arith.constant 0 : index
    %c5_67 = arith.constant 5 : index
    %c0_68 = arith.constant 0 : index
    %c0_69 = arith.constant 0 : index
    %39 = vector.load %arg2[%c0_66, %c5_67, %c0_68, %c0_69] : memref<1x8x8x128xf32, #tpu.memory_space<vmem>>, vector<1x1x8x128xf32>
    %40 = vector.shape_cast %39 : vector<1x1x8x128xf32> to vector<8x128xf32>
    %c8_70 = arith.constant 8 : index
    %c512_71 = arith.constant 512 : index
    %41 = vector.load %arg6[%c8_70, %c512_71] : memref<24x768xf32, #tpu.memory_space<vmem>>, vector<8x128xf32>
    tpu.vector_store %arg6[%c8_70, %c512_71], %40 {strides = array<i32>} : memref<24x768xf32, #tpu.memory_space<vmem>>, vector<8x128xf32>,
    %c0_72 = arith.constant 0 : index
    %c6 = arith.constant 6 : index
    %c0_73 = arith.constant 0 : index
    %c0_74 = arith.constant 0 : index
    %42 = vector.load %arg2[%c0_72, %c6, %c0_73, %c0_74] : memref<1x8x8x128xf32, #tpu.memory_space<vmem>>, vector<1x1x8x128xf32>
    %43 = vector.shape_cast %42 : vector<1x1x8x128xf32> to vector<8x128xf32>
    %c16_75 = arith.constant 16 : index
    %c512_76 = arith.constant 512 : index
    %44 = vector.load %arg6[%c16_75, %c512_76] : memref<24x768xf32, #tpu.memory_space<vmem>>, vector<8x128xf32>
    tpu.vector_store %arg6[%c16_75, %c512_76], %43 {strides = array<i32>} : memref<24x768xf32, #tpu.memory_space<vmem>>, vector<8x128xf32>,
    %c0_77 = arith.constant 0 : index
    %c5_78 = arith.constant 5 : index
    %c0_79 = arith.constant 0 : index
    %c0_80 = arith.constant 0 : index
    %45 = vector.load %arg2[%c0_77, %c5_78, %c0_79, %c0_80] : memref<1x8x8x128xf32, #tpu.memory_space<vmem>>, vector<1x1x8x128xf32>
    %46 = vector.shape_cast %45 : vector<1x1x8x128xf32> to vector<8x128xf32>
    %c0_81 = arith.constant 0 : index
    %c640 = arith.constant 640 : index
    %47 = vector.load %arg6[%c0_81, %c640] : memref<24x768xf32, #tpu.memory_space<vmem>>, vector<8x128xf32>
    tpu.vector_store %arg6[%c0_81, %c640], %46 {strides = array<i32>} : memref<24x768xf32, #tpu.memory_space<vmem>>, vector<8x128xf32>,
    %c0_82 = arith.constant 0 : index
    %c6_83 = arith.constant 6 : index
    %c0_84 = arith.constant 0 : index
    %c0_85 = arith.constant 0 : index
    %48 = vector.load %arg2[%c0_82, %c6_83, %c0_84, %c0_85] : memref<1x8x8x128xf32, #tpu.memory_space<vmem>>, vector<1x1x8x128xf32>
    %49 = vector.shape_cast %48 : vector<1x1x8x128xf32> to vector<8x128xf32>
    %c8_86 = arith.constant 8 : index
    %c640_87 = arith.constant 640 : index
    %50 = vector.load %arg6[%c8_86, %c640_87] : memref<24x768xf32, #tpu.memory_space<vmem>>, vector<8x128xf32>
    tpu.vector_store %arg6[%c8_86, %c640_87], %49 {strides = array<i32>} : memref<24x768xf32, #tpu.memory_space<vmem>>, vector<8x128xf32>,
    %c0_88 = arith.constant 0 : index
    %c7 = arith.constant 7 : index
    %c0_89 = arith.constant 0 : index
    %c0_90 = arith.constant 0 : index
    %51 = vector.load %arg2[%c0_88, %c7, %c0_89, %c0_90] : memref<1x8x8x128xf32, #tpu.memory_space<vmem>>, vector<1x1x8x128xf32>
    %52 = vector.shape_cast %51 : vector<1x1x8x128xf32> to vector<8x128xf32>
    %c16_91 = arith.constant 16 : index
    %c640_92 = arith.constant 640 : index
    %53 = vector.load %arg6[%c16_91, %c640_92] : memref<24x768xf32, #tpu.memory_space<vmem>>, vector<8x128xf32>
    tpu.vector_store %arg6[%c16_91, %c640_92], %52 {strides = array<i32>} : memref<24x768xf32, #tpu.memory_space<vmem>>, vector<8x128xf32>,
    %c0_93 = arith.constant 0 : index
    %c0_94 = arith.constant 0 : index
    %54 = vector.load %arg3[%c0_93, %c0_94] : memref<16x24xf32, #tpu.memory_space<vmem>>, vector<16x24xf32>
    %c0_95 = arith.constant 0 : index
    %c0_96 = arith.constant 0 : index
    %55 = vector.load %arg6[%c0_95, %c0_96] : memref<24x768xf32, #tpu.memory_space<vmem>>, vector<24x768xf32>
    %cst = arith.constant dense<0.000000e+00> : vector<16x768xf32>
    %56 = tpu.matmul %54, %55, %cst {dimension_numbers = #tpu.dot_dimension_numbers<[1], [0], [0], [1], [0, 0, 1, 1], [], []>} : vector<16x24xf32>, vector<24x768xf32>, vector<16x768xf32> -> vector<16x768xf32>
    %c0_97 = arith.constant 0 : index
    %c0_98 = arith.constant 0 : index
    %57 = vector.load %arg4[%c0_97, %c0_98] : memref<16x1xf32, #tpu.memory_space<vmem>>, vector<16x1xf32>
    %58 = vector.broadcast %57 : vector<16x1xf32> to vector<16x768xf32>
    %59 = arith.addf %56, %58 : vector<16x768xf32>
    %c16_99 = arith.constant 16 : index
    %c0_100 = arith.constant 0 : index
    %60 = vector.load %arg6[%c16_99, %c0_100] : memref<24x768xf32, #tpu.memory_space<vmem>>, vector<8x768xf32>
    %61 = vector.extract_strided_slice %59 {offsets = [0, 0], sizes = [8, 768], strides = [1, 1]} : vector<16x768xf32> to vector<8x768xf32>
    %62 = arith.addf %61, %60 : vector<8x768xf32>
    %63 = vector.extract_strided_slice %59 {offsets = [8, 0], sizes = [8, 768], strides = [1, 1]} : vector<16x768xf32> to vector<8x768xf32>
    %64 = arith.negf %63 : vector<8x768xf32>
    %65 = math.exp %64 : vector<8x768xf32>
    %cst_101 = arith.constant 1.000000e+00 : f32
    %66 = vector.broadcast %cst_101 : f32 to vector<8x768xf32>
    %67 = arith.addf %66, %65 : vector<8x768xf32>
    %68 = arith.divf %66, %67 : vector<8x768xf32>
    %69 = arith.mulf %62, %68 : vector<8x768xf32>
    %70 = vector.extract_strided_slice %69 {offsets = [0, 0], sizes = [8, 128], strides = [1, 1]} : vector<8x768xf32> to vector<8x128xf32>
    %c0_102 = arith.constant 0 : index
    %c0_103 = arith.constant 0 : index
    %c0_104 = arith.constant 0 : index
    %c0_105 = arith.constant 0 : index
    %71 = vector.load %arg5[%c0_102, %c0_103, %c0_104, %c0_105] : memref<1x6x8x128xf32, #tpu.memory_space<vmem>>, vector<1x1x8x128xf32>
    %72 = vector.shape_cast %71 : vector<1x1x8x128xf32> to vector<8x128xf32>
    %73 = vector.shape_cast %70 : vector<8x128xf32> to vector<1x1x8x128xf32>
    tpu.vector_store %arg5[%c0_102, %c0_103, %c0_104, %c0_105], %73 {strides = array<i32>} : memref<1x6x8x128xf32, #tpu.memory_space<vmem>>, vector<1x1x8x128xf32>,
    %74 = vector.extract_strided_slice %69 {offsets = [0, 128], sizes = [8, 128], strides = [1, 1]} : vector<8x768xf32> to vector<8x128xf32>
    %c0_106 = arith.constant 0 : index
    %c1_107 = arith.constant 1 : index
    %c0_108 = arith.constant 0 : index
    %c0_109 = arith.constant 0 : index
    %75 = vector.load %arg5[%c0_106, %c1_107, %c0_108, %c0_109] : memref<1x6x8x128xf32, #tpu.memory_space<vmem>>, vector<1x1x8x128xf32>
    %76 = vector.shape_cast %75 : vector<1x1x8x128xf32> to vector<8x128xf32>
    %77 = vector.shape_cast %74 : vector<8x128xf32> to vector<1x1x8x128xf32>
    tpu.vector_store %arg5[%c0_106, %c1_107, %c0_108, %c0_109], %77 {strides = array<i32>} : memref<1x6x8x128xf32, #tpu.memory_space<vmem>>, vector<1x1x8x128xf32>,
    %78 = vector.extract_strided_slice %69 {offsets = [0, 256], sizes = [8, 128], strides = [1, 1]} : vector<8x768xf32> to vector<8x128xf32>
    %c0_110 = arith.constant 0 : index
    %c2_111 = arith.constant 2 : index
    %c0_112 = arith.constant 0 : index
    %c0_113 = arith.constant 0 : index
    %79 = vector.load %arg5[%c0_110, %c2_111, %c0_112, %c0_113] : memref<1x6x8x128xf32, #tpu.memory_space<vmem>>, vector<1x1x8x128xf32>
    %80 = vector.shape_cast %79 : vector<1x1x8x128xf32> to vector<8x128xf32>
    %81 = vector.shape_cast %78 : vector<8x128xf32> to vector<1x1x8x128xf32>
    tpu.vector_store %arg5[%c0_110, %c2_111, %c0_112, %c0_113], %81 {strides = array<i32>} : memref<1x6x8x128xf32, #tpu.memory_space<vmem>>, vector<1x1x8x128xf32>,
    %82 = vector.extract_strided_slice %69 {offsets = [0, 384], sizes = [8, 128], strides = [1, 1]} : vector<8x768xf32> to vector<8x128xf32>
    %c0_114 = arith.constant 0 : index
    %c3_115 = arith.constant 3 : index
    %c0_116 = arith.constant 0 : index
    %c0_117 = arith.constant 0 : index
    %83 = vector.load %arg5[%c0_114, %c3_115, %c0_116, %c0_117] : memref<1x6x8x128xf32, #tpu.memory_space<vmem>>, vector<1x1x8x128xf32>
    %84 = vector.shape_cast %83 : vector<1x1x8x128xf32> to vector<8x128xf32>
    %85 = vector.shape_cast %82 : vector<8x128xf32> to vector<1x1x8x128xf32>
    tpu.vector_store %arg5[%c0_114, %c3_115, %c0_116, %c0_117], %85 {strides = array<i32>} : memref<1x6x8x128xf32, #tpu.memory_space<vmem>>, vector<1x1x8x128xf32>,
    %86 = vector.extract_strided_slice %69 {offsets = [0, 512], sizes = [8, 128], strides = [1, 1]} : vector<8x768xf32> to vector<8x128xf32>
    %c0_118 = arith.constant 0 : index
    %c4_119 = arith.constant 4 : index
    %c0_120 = arith.constant 0 : index
    %c0_121 = arith.constant 0 : index
    %87 = vector.load %arg5[%c0_118, %c4_119, %c0_120, %c0_121] : memref<1x6x8x128xf32, #tpu.memory_space<vmem>>, vector<1x1x8x128xf32>
    %88 = vector.shape_cast %87 : vector<1x1x8x128xf32> to vector<8x128xf32>
    %89 = vector.shape_cast %86 : vector<8x128xf32> to vector<1x1x8x128xf32>
    tpu.vector_store %arg5[%c0_118, %c4_119, %c0_120, %c0_121], %89 {strides = array<i32>} : memref<1x6x8x128xf32, #tpu.memory_space<vmem>>, vector<1x1x8x128xf32>,
    %90 = vector.extract_strided_slice %69 {offsets = [0, 640], sizes = [8, 128], strides = [1, 1]} : vector<8x768xf32> to vector<8x128xf32>
    %c0_122 = arith.constant 0 : index
    %c5_123 = arith.constant 5 : index
    %c0_124 = arith.constant 0 : index
    %c0_125 = arith.constant 0 : index
    %91 = vector.load %arg5[%c0_122, %c5_123, %c0_124, %c0_125] : memref<1x6x8x128xf32, #tpu.memory_space<vmem>>, vector<1x1x8x128xf32>
    %92 = vector.shape_cast %91 : vector<1x1x8x128xf32> to vector<8x128xf32>
    %93 = vector.shape_cast %90 : vector<8x128xf32> to vector<1x1x8x128xf32>
    tpu.vector_store %arg5[%c0_122, %c5_123, %c0_124, %c0_125], %93 {strides = array<i32>} : memref<1x6x8x128xf32, #tpu.memory_space<vmem>>, vector<1x1x8x128xf32>,
    return
  }
  func.func @transform_0(%arg0: i32, %arg1: i32) -> (i32, i32, i32, i32) {
    %c0_i32 = arith.constant 0 : i32
    %c0_i32_0 = arith.constant 0 : i32
    %c0_i32_1 = arith.constant 0 : i32
    return %arg0, %c0_i32, %c0_i32_0, %arg1 : i32, i32, i32, i32
  }
  func.func @transform_1(%arg0: i32, %arg1: i32) -> (i32, i32) {
    %c0_i32 = arith.constant 0 : i32
    %c0_i32_0 = arith.constant 0 : i32
    %c0_i32_1 = arith.constant 0 : i32
    return %c0_i32, %c0_i32_0 : i32, i32
  }
  func.func @transform_2(%arg0: i32, %arg1: i32) -> (i32, i32) {
    %c0_i32 = arith.constant 0 : i32
    %c0_i32_0 = arith.constant 0 : i32
    %c0_i32_1 = arith.constant 0 : i32
    return %c0_i32, %c0_i32_0 : i32, i32
  }
  func.func @transform_3(%arg0: i32, %arg1: i32) -> (i32, i32, i32, i32) {
    %c0_i32 = arith.constant 0 : i32
    %c0_i32_0 = arith.constant 0 : i32
    %c0_i32_1 = arith.constant 0 : i32
    return %arg0, %c0_i32, %c0_i32_0, %arg1 : i32, i32, i32, i32
  }
}

</mosaic_0001>

<llo_original>
// kernel: tpu_custom_call.1
$region0: #{tpu_custom_call.1}
  #allocation0 [shape = 'u32[]', space=smem, size = 0x4, offset = 0x4, fixed_abs, tag = 'smem constant byte address 0x4 - core index']
  #allocation1 [shape = 'u32[72,128]{1,0:T(1,128)}', space=vmem, size = 0x9000, scoped, tag = 'internal scratch']
  #allocation2 [shape = 'f32[24,768]{1,0:T(8,128)}', space=vmem, size = 0x12000, scoped, tag = 'scratch operand']
  %s0 = inlined_call_operand.hbm [shape: f32[2,8,8,128], index: 0, kind: input, shape index: {}]
  %s1 = inlined_call_operand.vmem [shape: f32[16,24], index: 1, kind: input, shape index: {}]
  %s2 = inlined_call_operand.vmem [shape: f32[16,1], index: 2, kind: input, shape index: {}]
  %s3 = inlined_call_operand.hbm [shape: f32[2,6,8,128], index: 3, kind: output, shape index: {}]
  %s4 = sld [smem:[#allocation0]]
  $region49: #{tpu_custom_call.1} parent=0
    _
  %s6 = ssub.s32 1, %s4
  %s7 = scalar_select 0, %s6, %s4
  $region1: #{tpu_custom_call.1} parent=0
    #allocation3 [shape = 'u8[65536]{0}', space=vmem, size = 0x10000, scoped, tag = 'input window, operand 0']
    #allocation4 [shape = 's32[2]{0}', space=sflag, size = 0x8, scoped, tag = 'scoped memory for tpu_custom_call.1']
    #allocation5 [shape = 's32[2]{0}', space=sflag, size = 0x8, scoped, tag = 'scoped memory for tpu_custom_call.1']
    #allocation6 [shape = 'u8[49152]{0}', space=vmem, size = 0xc000, scoped, tag = 'output window, operand 0']
    %8 = vsyncpa [#allocation4], 0
    %s9 = scalar_lea.sflag [#allocation4], 1
    %10 = vsyncpa %s9, 0
    %11 = vsyncpa [#allocation5], 0
    %s12 = scalar_lea.sflag [#allocation5], 1
    %13 = vsyncpa %s12, 0
    loop: start=0, step=1, limit=4
    $region2: #{tpu_custom_call.1} parent=1 // loop_pre_header
      _
    $region3: #{tpu_custom_call.1} parent=1 // loop_header
      %s15 = sphi 0, %s19
      %p16 = scmp.ge.s32.totalorder %s15, 4
      %s22 = sphi 0, %s34
      %s23 = sphi 0, %s30
      %s24 = sphi 0, %s22
      %s25 = sphi 0, %s23
      %s26 = sphi 0, %s24
      %s27 = sphi 0, %s25
      %s39 = sphi 0, %s41
      %s42 = sphi 0, %s39
      %s43 = sphi 0, %s42
      %s59 = sphi 0, %s43
      %s63 = sphi 0, %s63
      %s65 = sphi 0, %s63
      %s66 = sphi 0, %s65
      %s80 = sphi 0, %s66
      %s84 = sphi 0, %s84
      %s86 = sphi 0, %s84
      %s87 = sphi 0, %s86
      %s101 = sphi 0, %s87
      %s109 = sphi 0, %s111
      %s112 = sphi 0, %s109
      %s113 = sphi 0, %s112
      %s129 = sphi 0, %s113
    $region4: #{tpu_custom_call.1} parent=1 // loop_header_branch
      %18 = sbr.rel (%p16) target = $region8
    $region5: #{tpu_custom_call.1} parent=1 // loop_body
      %s20 = ssub.s32 %s15, 1
      %s21 = ssub.s32 %s15, 2
      %s28 = sadd.s32 1, %s23
      %p29 = scmp.ge.s32.totalorder %s28, 1
      %s30 = scalar_select %p29, 0, %s28
      %s31 = sadd.s32 1, %s22
      %s32 = scalar_select %p29, %s31, %s22
      %p33 = scmp.ge.s32.totalorder %s32, 2
      %s34 = scalar_select %p33, 0, %s32
      %s35 = ssub.s32 %s22, %s34
      %s36 = ssub.s32 %s23, %s30
      %s37 = sor.u32 %s35, %s36
      %p38 = scmp.eq.s32.totalorder %s37, 0
      %s40 = sadd.s32 %s39, 1
      %s41 = scalar_select %p38, %s39, %s40
      %p44 = pneg %p38
      %p45 = scmp.eq.s32.totalorder %s15, 1
      %p46 = por %p44, %p45
      %p47 = scmp.ne.s32.totalorder %s39, %s42
      %p48 = scmp.eq.s32.totalorder %s15, 0
      %p49 = por %p47, %p48
      %p50 = scmp.ne.s32.totalorder %s39, %s42
      %p51 = scmp.eq.s32.totalorder %s20, 1
      %p52 = por %p50, %p51
      %p53 = scmp.ne.s32.totalorder %s42, %s43
      %p54 = scmp.eq.s32.totalorder %s20, 0
      %p55 = por %p53, %p54
      %p56 = scmp.ne.s32.totalorder %s42, %s43
      %p57 = scmp.eq.s32.totalorder %s21, 1
      %p58 = por %p56, %p57
      %p60 = scmp.ne.s32.totalorder %s43, %s59
      %p61 = scmp.eq.s32.totalorder %s21, 0
      %p62 = por %p60, %p61
      %s64 = sadd.s32 %s63, 1
      %p67 = scmp.eq.s32.totalorder %s15, 1
      %p68 = scmp.ne.s32.totalorder %s63, %s65
      %p69 = scmp.eq.s32.totalorder %s15, 0
      %p70 = por %p68, %p69
      %p71 = scmp.ne.s32.totalorder %s63, %s65
      %p72 = scmp.eq.s32.totalorder %s20, 1
      %p73 = por %p71, %p72
      %p74 = scmp.ne.s32.totalorder %s65, %s66
      %p75 = scmp.eq.s32.totalorder %s20, 0
      %p76 = por %p74, %p75
      %p77 = scmp.ne.s32.totalorder %s65, %s66
      %p78 = scmp.eq.s32.totalorder %s21, 1
      %p79 = por %p77, %p78
      %p81 = scmp.ne.s32.totalorder %s66, %s80
      %p82 = scmp.eq.s32.totalorder %s21, 0
      %p83 = por %p81, %p82
      %s85 = sadd.s32 %s84, 1
      %p88 = scmp.eq.s32.totalorder %s15, 1
      %p89 = scmp.ne.s32.totalorder %s84, %s86
      %p90 = scmp.eq.s32.totalorder %s15, 0
      %p91 = por %p89, %p90
      %p92 = scmp.ne.s32.totalorder %s84, %s86
      %p93 = scmp.eq.s32.totalorder %s20, 1
      %p94 = por %p92, %p93
      %p95 = scmp.ne.s32.totalorder %s86, %s87
      %p96 = scmp.eq.s32.totalorder %s20, 0
      %p97 = por %p95, %p96
      %p98 = scmp.ne.s32.totalorder %s86, %s87
      %p99 = scmp.eq.s32.totalorder %s21, 1
      %p100 = por %p98, %p99
      %p102 = scmp.ne.s32.totalorder %s87, %s101
      %p103 = scmp.eq.s32.totalorder %s21, 0
      %p104 = por %p102, %p103
      %s105 = ssub.s32 %s22, %s34
      %s106 = ssub.s32 %s23, %s30
      %s107 = sor.u32 %s105, %s106
      %p108 = scmp.eq.s32.totalorder %s107, 0
      %s110 = sadd.s32 %s109, 1
      %s111 = scalar_select %p108, %s109, %s110
      %p114 = pneg %p108
      %p115 = scmp.eq.s32.totalorder %s15, 1
      %p116 = por %p114, %p115
      %p117 = scmp.ne.s32.totalorder %s109, %s112
      %p118 = scmp.eq.s32.totalorder %s15, 0
      %p119 = por %p117, %p118
      %p120 = scmp.ne.s32.totalorder %s109, %s112
      %p121 = scmp.eq.s32.totalorder %s20, 1
      %p122 = por %p120, %p121
      %p123 = scmp.ne.s32.totalorder %s112, %s113
      %p124 = scmp.eq.s32.totalorder %s20, 0
      %p125 = por %p123, %p124
      %p126 = scmp.ne.s32.totalorder %s112, %s113
      %p127 = scmp.eq.s32.totalorder %s21, 1
      %p128 = por %p126, %p127
      %p130 = scmp.ne.s32.totalorder %s113, %s129
      %p131 = scmp.eq.s32.totalorder %s21, 0
      %p132 = por %p130, %p131
      %p133 = scmp.le.s32.totalorder 1, %s15
      %p134 = scmp.lt.s32.totalorder %s15, 3
      %p135 = pnand %p133, %p134
      %p136 = pneg %p135
      // Predicated region
      $region9: #{tpu_custom_call.1} parent=5 // pred_check
        _
      $region10: #{tpu_custom_call.1} parent=5 // pred_check_branch
        %138 = sbr.rel (%p135) target = $region12
      $region11: #{tpu_custom_call.1} parent=5 // pred_region
        %s139 = ssub.s32 %s15, 1
        // Predicated region
        $region13: #{tpu_custom_call.1} parent=11 // pred_check
          %p140 = pneg %p76
        $region14: #{tpu_custom_call.1} parent=11 // pred_check_branch
          %142 = sbr.rel (%p140) target = $region16
        $region15: #{tpu_custom_call.1} parent=11 // pred_region
          _
        $region16: #{tpu_custom_call.1} parent=11 // pred_fallthru
          _
        // Predicated region
        $region17: #{tpu_custom_call.1} parent=11 // pred_check
          %p143 = pneg %p97
        $region18: #{tpu_custom_call.1} parent=11 // pred_check_branch
          %145 = sbr.rel (%p143) target = $region20
        $region19: #{tpu_custom_call.1} parent=11 // pred_region
          _
        $region20: #{tpu_custom_call.1} parent=11 // pred_fallthru
          _
      $region12: #{tpu_custom_call.1} parent=5 // pred_fallthru
        _
      %p146 = scmp.lt.s32.totalorder %s15, 2
      // Predicated region
      $region21: #{tpu_custom_call.1} parent=5 // pred_check
        %p147 = pneg %p146
      $region22: #{tpu_custom_call.1} parent=5 // pred_check_branch
        %149 = sbr.rel (%p147) target = $region24
      $region23: #{tpu_custom_call.1} parent=5 // pred_region
        // Predicated region
        $region25: #{tpu_custom_call.1} parent=23 // pred_check
          %p150 = pneg %p49
        $region26: #{tpu_custom_call.1} parent=23 // pred_check_branch
          %152 = sbr.rel (%p150) target = $region28
        $region27: #{tpu_custom_call.1} parent=23 // pred_region
          %s153 = sand.u32 %s39, 1
          %s154 = scalar_lea.sflag [#allocation4], %s153
          %s155 = sand.u32 %s39, 1
          %s156 = smul.addr %s155, 64
          %s157 = scalar_lea.vmem [#allocation3], %s156
          %159 = vsyncadd %s154, 0
          %s160 = smul.addr %s22, 8
          %s161 = sadd.s32 %s23, %s160
          %s162 = smul.addr %s161, 8
          %s163 = scalar_lea.hbm %s0, %s162
          %s164 = sshll.u32 %s163, 4
          %s165 = int_to_ptr.hbm [resolvable:$true] %s164
          %s166 = sshll.u32 %s157, 4
          %s167 = int_to_ptr.vmem [resolvable:$true] %s166
          %172 = dma.hbm_to_vmem [thread:$0]  %s165, 1024, %s167, %s154, 128, 128, 8
        $region28: #{tpu_custom_call.1} parent=23 // pred_fallthru
          _
      $region24: #{tpu_custom_call.1} parent=5 // pred_fallthru
        _
      %p173 = scmp.le.s32.totalorder 1, %s15
      %p174 = scmp.lt.s32.totalorder %s15, 3
      %p175 = pnand %p173, %p174
      %p176 = pneg %p175
      // Predicated region
      $region29: #{tpu_custom_call.1} parent=5 // pred_check
        _
      $region30: #{tpu_custom_call.1} parent=5 // pred_check_branch
        %178 = sbr.rel (%p175) target = $region32
      $region31: #{tpu_custom_call.1} parent=5 // pred_region
        %s179 = ssub.s32 %s15, 1
        %s180 = sand.u32 %s42, 1
        %s181 = scalar_lea.sflag [#allocation4], %s180
        %s182 = sand.u32 %s42, 1
        %s183 = smul.addr %s182, 64
        %s184 = scalar_lea.vmem [#allocation3], %s183
        // Predicated region
        $region33: #{tpu_custom_call.1} parent=31 // pred_check
          %p185 = pneg %p55
        $region34: #{tpu_custom_call.1} parent=31 // pred_check_branch
          %187 = sbr.rel (%p185) target = $region36
        $region35: #{tpu_custom_call.1} parent=31 // pred_region
          %189 = dma.done %s181, 1024
        $region36: #{tpu_custom_call.1} parent=31 // pred_fallthru
          _
        %s190 = sand.u32 %s42, 1
        %s191 = scalar_lea.sflag [#allocation4], %s190
        %s192 = sand.u32 %s42, 1
        %s193 = smul.addr %s192, 64
        %s194 = scalar_lea.vmem [#allocation3], %s193
        %p195 = pneg %p55
        %p196 = pneg %p52
        %p197 = pneg %p76
        %p198 = pneg %p73
        %p199 = pneg %p97
        %p200 = pneg %p94
        %p201 = pneg %p125
        %p202 = pneg %p122
        %s203 = sand.u32 %s112, 1
        %s204 = scalar_lea.sflag [#allocation5], %s203
        %s205 = sand.u32 %s112, 1
        %s206 = smul.addr %s205, 48
        %s207 = scalar_lea.vmem [#allocation6], %s206
        %v208 = vld [vmem:[%s184] sm:$0xff]
        %209 = vst [vmem:[#allocation2] sm:$0xff] %v208
        %s210 = scalar_lea.vmem %s184, 8 [#allocation3]
        %v211 = vld [vmem:[%s210] sm:$0xff]
        %212 = vst [vmem:[#allocation2 + $0x30] sm:$0xff] %v211
        %s213 = scalar_lea.vmem %s184, 16 [#allocation3]
        %v214 = vld [vmem:[%s213] sm:$0xff]
        %215 = vst [vmem:[#allocation2 + $0x60] sm:$0xff] %v214
        %v216 = vld [vmem:[%s210] sm:$0xff]
        %217 = vst [vmem:[#allocation2 + $0x8] sm:$0xff] %v216
        %v218 = vld [vmem:[%s213] sm:$0xff]
        %219 = vst [vmem:[#allocation2 + $0x38] sm:$0xff] %v218
        %s220 = scalar_lea.vmem %s184, 24 [#allocation3]
        %v221 = vld [vmem:[%s220] sm:$0xff]
        %222 = vst [vmem:[#allocation2 + $0x68] sm:$0xff] %v221
        %v223 = vld [vmem:[%s213] sm:$0xff]
        %224 = vst [vmem:[#allocation2 + $0x10] sm:$0xff] %v223
        %v225 = vld [vmem:[%s220] sm:$0xff]
        %226 = vst [vmem:[#allocation2 + $0x40] sm:$0xff] %v225
        %s227 = scalar_lea.vmem %s184, 32 [#allocation3]
        %v228 = vld [vmem:[%s227] sm:$0xff]
        %229 = vst [vmem:[#allocation2 + $0x70] sm:$0xff] %v228
        %v230 = vld [vmem:[%s220] sm:$0xff]
        %231 = vst [vmem:[#allocation2 + $0x18] sm:$0xff] %v230
        %v232 = vld [vmem:[%s227] sm:$0xff]
        %233 = vst [vmem:[#allocation2 + $0x48] sm:$0xff] %v232
        %s234 = scalar_lea.vmem %s184, 40 [#allocation3]
        %v235 = vld [vmem:[%s234] sm:$0xff]
        %236 = vst [vmem:[#allocation2 + $0x78] sm:$0xff] %v235
        %v237 = vld [vmem:[%s227] sm:$0xff]
        %238 = vst [vmem:[#allocation2 + $0x20] sm:$0xff] %v237
        %v239 = vld [vmem:[%s234] sm:$0xff]
        %240 = vst [vmem:[#allocation2 + $0x50] sm:$0xff] %v239
        %s241 = scalar_lea.vmem %s184, 48 [#allocation3]
        %v242 = vld [vmem:[%s241] sm:$0xff]
        %243 = vst [vmem:[#allocation2 + $0x80] sm:$0xff] %v242
        %v244 = vld [vmem:[%s234] sm:$0xff]
        %245 = vst [vmem:[#allocation2 + $0x28] sm:$0xff] %v244
        %v246 = vld [vmem:[%s241] sm:$0xff]
        %247 = vst [vmem:[#allocation2 + $0x58] sm:$0xff] %v246
        %s248 = scalar_lea.vmem %s184, 56 [#allocation3]
        %v249 = vld [vmem:[%s248] sm:$0xff]
        %250 = vst [vmem:[#allocation2 + $0x88] sm:$0xff] %v249
        %v251 = vld [vmem:[%s1] sm:$0xff]
        %v252 = vld [vmem:[%s1 + $0x8] sm:$0xff]
        %v253 = vld [vmem:[#allocation2] sm:$0xff]
        %v254 = vld [vmem:[#allocation2 + $0x8] sm:$0xff]
        %v255 = vld [vmem:[#allocation2 + $0x10] sm:$0xff]
        %v256 = vld [vmem:[#allocation2 + $0x18] sm:$0xff]
        %v257 = vld [vmem:[#allocation2 + $0x20] sm:$0xff]
        %v258 = vld [vmem:[#allocation2 + $0x28] sm:$0xff]
        %v259 = vld [vmem:[#allocation2 + $0x30] sm:$0xff]
        %v260 = vld [vmem:[#allocation2 + $0x38] sm:$0xff]
        %v261 = vld [vmem:[#allocation2 + $0x40] sm:$0xff]
        %v262 = vld [vmem:[#allocation2 + $0x48] sm:$0xff]
        %v263 = vld [vmem:[#allocation2 + $0x50] sm:$0xff]
        %v264 = vld [vmem:[#allocation2 + $0x58] sm:$0xff]
        %v265 = vld [vmem:[#allocation2 + $0x60] sm:$0xff]
        %v266 = vld [vmem:[#allocation2 + $0x68] sm:$0xff]
        %v267 = vld [vmem:[#allocation2 + $0x70] sm:$0xff]
        %v268 = vld [vmem:[#allocation2 + $0x78] sm:$0xff]
        %v269 = vld [vmem:[#allocation2 + $0x80] sm:$0xff]
        %v270 = vld [vmem:[#allocation2 + $0x88] sm:$0xff]
        %v271 = vld [vmem:[%s2] sm:$0xff]
        %v272 = vld [vmem:[%s2 + $0x8] sm:$0xff]
        %274 = vset.pattern.permute.xlu0 0
        %275 = vperm.xlu0 %274, %v271
        %v276 = vpop.permute.xlu0 %275
        %279 = vset.pattern.permute.xlu0 0
        %280 = vperm.xlu0 %279, %v272
        %v281 = vpop.permute.xlu0 %280
        %vm283 = vcmask 195584
        %v285 = vsel %vm283, %v251, 0
        %v288 = vsel %vm283, %v252, 0
        %290 = vmatpush.msra.mxu0 0.0
        %291 = vmatpush.msra.mxu0 0.0
        %292 = vmatpush.msra.mxu0 0.0
        %293 = vmatpush.msra.mxu0 0.0
        %294 = vmatpush.msra.mxu0 0.0
        %295 = vmatpush.msra.mxu0 0.0
        %296 = vmatpush.msra.mxu0 0.0
        %297 = vmatpush.msra.mxu0 0.0
        %298 = vmatpush.msra.mxu0 0.0
        %299 = vmatpush.msra.mxu0 0.0
        %300 = vmatpush.msra.mxu0 0.0
        %301 = vmatpush.msra.mxu0 0.0
        %302 = vmatpush.msra.mxu0 0.0
        %303 = vmatpush.msra.mxu0 %v265
        %304 = vmatpush.msra.mxu0 %v259
        %305 = vmatpush.msra.mxu0 %v253
        %306 = vmatmul.f32.gmra.mxu0 %v285
        %v307 = vpop.f32.mrf.mxu0
        %v308 = vadd.f32 %v276, %v307
        %309 = vmatmul.f32.gmra.mxu0 %v288
        %v310 = vpop.f32.mrf.mxu0
        %v311 = vadd.f32 %v281, %v310
        %312 = vdwg.mxu0
        %313 = vmatpush.msra.mxu0 0.0
        %314 = vmatpush.msra.mxu0 0.0
        %315 = vmatpush.msra.mxu0 0.0
        %316 = vmatpush.msra.mxu0 0.0
        %317 = vmatpush.msra.mxu0 0.0
        %318 = vmatpush.msra.mxu0 0.0
        %319 = vmatpush.msra.mxu0 0.0
        %320 = vmatpush.msra.mxu0 0.0
        %321 = vmatpush.msra.mxu0 0.0
        %322 = vmatpush.msra.mxu0 0.0
        %323 = vmatpush.msra.mxu0 0.0
        %324 = vmatpush.msra.mxu0 0.0
        %325 = vmatpush.msra.mxu0 0.0
        %326 = vmatpush.msra.mxu0 %v266
        %327 = vmatpush.msra.mxu0 %v260
        %328 = vmatpush.msra.mxu0 %v254
        %329 = vmatmul.f32.gmra.mxu0 %v285
        %v330 = vpop.f32.mrf.mxu0
        %v331 = vadd.f32 %v276, %v330
        %332 = vmatmul.f32.gmra.mxu0 %v288
        %v333 = vpop.f32.mrf.mxu0
        %v334 = vadd.f32 %v281, %v333
        %335 = vdwg.mxu0
        %336 = vmatpush.msra.mxu0 0.0
        %337 = vmatpush.msra.mxu0 0.0
        %338 = vmatpush.msra.mxu0 0.0
        %339 = vmatpush.msra.mxu0 0.0
        %340 = vmatpush.msra.mxu0 0.0
        %341 = vmatpush.msra.mxu0 0.0
        %342 = vmatpush.msra.mxu0 0.0
        %343 = vmatpush.msra.mxu0 0.0
        %344 = vmatpush.msra.mxu0 0.0
        %345 = vmatpush.msra.mxu0 0.0
        %346 = vmatpush.msra.mxu0 0.0
        %347 = vmatpush.msra.mxu0 0.0
        %348 = vmatpush.msra.mxu0 0.0
        %349 = vmatpush.msra.mxu0 %v267
        %350 = vmatpush.msra.mxu0 %v261
        %351 = vmatpush.msra.mxu0 %v255
        %352 = vmatmul.f32.gmra.mxu0 %v285
        %v353 = vpop.f32.mrf.mxu0
        %v354 = vadd.f32 %v276, %v353
        %355 = vmatmul.f32.gmra.mxu0 %v288
        %v356 = vpop.f32.mrf.mxu0
        %v357 = vadd.f32 %v281, %v356
        %358 = vdwg.mxu0
        %359 = vmatpush.msra.mxu0 0.0
        %360 = vmatpush.msra.mxu0 0.0
        %361 = vmatpush.msra.mxu0 0.0
        %362 = vmatpush.msra.mxu0 0.0
        %363 = vmatpush.msra.mxu0 0.0
        %364 = vmatpush.msra.mxu0 0.0
        %365 = vmatpush.msra.mxu0 0.0
        %366 = vmatpush.msra.mxu0 0.0
        %367 = vmatpush.msra.mxu0 0.0
        %368 = vmatpush.msra.mxu0 0.0
        %369 = vmatpush.msra.mxu0 0.0
        %370 = vmatpush.msra.mxu0 0.0
        %371 = vmatpush.msra.mxu0 0.0
        %372 = vmatpush.msra.mxu0 %v268
        %373 = vmatpush.msra.mxu0 %v262
        %374 = vmatpush.msra.mxu0 %v256
        %375 = vmatmul.f32.gmra.mxu0 %v285
        %v376 = vpop.f32.mrf.mxu0
        %v377 = vadd.f32 %v276, %v376
        %378 = vmatmul.f32.gmra.mxu0 %v288
        %v379 = vpop.f32.mrf.mxu0
        %v380 = vadd.f32 %v281, %v379
        %381 = vdwg.mxu0
        %382 = vmatpush.msra.mxu0 0.0
        %383 = vmatpush.msra.mxu0 0.0
        %384 = vmatpush.msra.mxu0 0.0
        %385 = vmatpush.msra.mxu0 0.0
        %386 = vmatpush.msra.mxu0 0.0
        %387 = vmatpush.msra.mxu0 0.0
        %388 = vmatpush.msra.mxu0 0.0
        %389 = vmatpush.msra.mxu0 0.0
        %390 = vmatpush.msra.mxu0 0.0
        %391 = vmatpush.msra.mxu0 0.0
        %392 = vmatpush.msra.mxu0 0.0
        %393 = vmatpush.msra.mxu0 0.0
        %394 = vmatpush.msra.mxu0 0.0
        %395 = vmatpush.msra.mxu0 %v269
        %396 = vmatpush.msra.mxu0 %v263
        %397 = vmatpush.msra.mxu0 %v257
        %398 = vmatmul.f32.gmra.mxu0 %v285
        %v399 = vpop.f32.mrf.mxu0
        %v400 = vadd.f32 %v276, %v399
        %401 = vmatmul.f32.gmra.mxu0 %v288
        %v402 = vpop.f32.mrf.mxu0
        %v403 = vadd.f32 %v281, %v402
        %404 = vdwg.mxu0
        %405 = vmatpush.msra.mxu0 0.0
        %406 = vmatpush.msra.mxu0 0.0
        %407 = vmatpush.msra.mxu0 0.0
        %408 = vmatpush.msra.mxu0 0.0
        %409 = vmatpush.msra.mxu0 0.0
        %410 = vmatpush.msra.mxu0 0.0
        %411 = vmatpush.msra.mxu0 0.0
        %412 = vmatpush.msra.mxu0 0.0
        %413 = vmatpush.msra.mxu0 0.0
        %414 = vmatpush.msra.mxu0 0.0
        %415 = vmatpush.msra.mxu0 0.0
        %416 = vmatpush.msra.mxu0 0.0
        %417 = vmatpush.msra.mxu0 0.0
        %418 = vmatpush.msra.mxu0 %v270
        %419 = vmatpush.msra.mxu0 %v264
        %420 = vmatpush.msra.mxu0 %v258
        %421 = vmatmul.f32.gmra.mxu0 %v285
        %v422 = vpop.f32.mrf.mxu0
        %v423 = vadd.f32 %v276, %v422
        %424 = vmatmul.f32.gmra.mxu0 %v288
        %v425 = vpop.f32.mrf.mxu0
        %v426 = vadd.f32 %v281, %v425
        %427 = vdwg.mxu0
        %v428 = vadd.f32 %v308, %v265
        %v429 = vadd.f32 %v331, %v266
        %v430 = vadd.f32 %v354, %v267
        %v431 = vadd.f32 %v377, %v268
        %v432 = vadd.f32 %v400, %v269
        %v433 = vadd.f32 %v423, %v270
        %v434 = vxor.u32 %v311, 2147483648
        %v435 = vxor.u32 %v334, 2147483648
        %v436 = vxor.u32 %v357, 2147483648
        %v437 = vxor.u32 %v380, 2147483648
        %v438 = vxor.u32 %v403, 2147483648
        %v439 = vxor.u32 %v426, 2147483648
        %v440 = vmul.f32 %v434, 1.442695
        %v441 = vpow.pop %v440
        %v442 = vmul.f32 %v435, 1.442695
        %v443 = vpow.pop %v442
        %v444 = vmul.f32 %v436, 1.442695
        %v445 = vpow.pop %v444
        %v446 = vmul.f32 %v437, 1.442695
        %v447 = vpow.pop %v446
        %v448 = vmul.f32 %v438, 1.442695
        %v449 = vpow.pop %v448
        %v450 = vmul.f32 %v439, 1.442695
        %v451 = vpow.pop %v450
        %v452 = vadd.f32 %v441, 1.0
        %v453 = vadd.f32 %v443, 1.0
        %v454 = vadd.f32 %v445, 1.0
        %v455 = vadd.f32 %v447, 1.0
        %v456 = vadd.f32 %v449, 1.0
        %v457 = vadd.f32 %v451, 1.0
        %v458 = vrcp.pop %v452
        %v459 = vmul.f32 %v452, %v458
        %v460 = vsub.f32 1.0, %v459
        %v461 = vmul.f32 %v458, %v460
        %v462 = vadd.f32 %v458, %v461
        %vm463 = vweird.f32 %v452
        %vm464 = vweird.f32 %v458
        %vm465 = vmor %vm463, %vm464
        %v466 = vsel %vm465, %v458, %v462
        %v467 = vand.u32 2147483647, %v452
        %vm468 = vcmp.eq.f32.partialorder %v467, 8.507059e+37
        %v469 = vand.u32 %v452, 2147483648
        %v470 = vor.u32 1.1754944e-38, %v469
        %v471 = vsel %vm468, %v470, %v466
        %v472 = vmul.f32 1.0, %v471
        %v473 = vrcp.pop %v453
        %v474 = vmul.f32 %v453, %v473
        %v475 = vsub.f32 1.0, %v474
        %v476 = vmul.f32 %v473, %v475
        %v477 = vadd.f32 %v473, %v476
        %vm478 = vweird.f32 %v453
        %vm479 = vweird.f32 %v473
        %vm480 = vmor %vm478, %vm479
        %v481 = vsel %vm480, %v473, %v477
        %v482 = vand.u32 2147483647, %v453
        %vm483 = vcmp.eq.f32.partialorder %v482, 8.507059e+37
        %v484 = vand.u32 %v453, 2147483648
        %v485 = vor.u32 1.1754944e-38, %v484
        %v486 = vsel %vm483, %v485, %v481
        %v487 = vmul.f32 1.0, %v486
        %v488 = vrcp.pop %v454
        %v489 = vmul.f32 %v454, %v488
        %v490 = vsub.f32 1.0, %v489
        %v491 = vmul.f32 %v488, %v490
        %v492 = vadd.f32 %v488, %v491
        %vm493 = vweird.f32 %v454
        %vm494 = vweird.f32 %v488
        %vm495 = vmor %vm493, %vm494
        %v496 = vsel %vm495, %v488, %v492
        %v497 = vand.u32 2147483647, %v454
        %vm498 = vcmp.eq.f32.partialorder %v497, 8.507059e+37
        %v499 = vand.u32 %v454, 2147483648
        %v500 = vor.u32 1.1754944e-38, %v499
        %v501 = vsel %vm498, %v500, %v496
        %v502 = vmul.f32 1.0, %v501
        %v503 = vrcp.pop %v455
        %v504 = vmul.f32 %v455, %v503
        %v505 = vsub.f32 1.0, %v504
        %v506 = vmul.f32 %v503, %v505
        %v507 = vadd.f32 %v503, %v506
        %vm508 = vweird.f32 %v455
        %vm509 = vweird.f32 %v503
        %vm510 = vmor %vm508, %vm509
        %v511 = vsel %vm510, %v503, %v507
        %v512 = vand.u32 2147483647, %v455
        %vm513 = vcmp.eq.f32.partialorder %v512, 8.507059e+37
        %v514 = vand.u32 %v455, 2147483648
        %v515 = vor.u32 1.1754944e-38, %v514
        %v516 = vsel %vm513, %v515, %v511
        %v517 = vmul.f32 1.0, %v516
        %v518 = vrcp.pop %v456
        %v519 = vmul.f32 %v456, %v518
        %v520 = vsub.f32 1.0, %v519
        %v521 = vmul.f32 %v518, %v520
        %v522 = vadd.f32 %v518, %v521
        %vm523 = vweird.f32 %v456
        %vm524 = vweird.f32 %v518
        %vm525 = vmor %vm523, %vm524
        %v526 = vsel %vm525, %v518, %v522
        %v527 = vand.u32 2147483647, %v456
        %vm528 = vcmp.eq.f32.partialorder %v527, 8.507059e+37
        %v529 = vand.u32 %v456, 2147483648
        %v530 = vor.u32 1.1754944e-38, %v529
        %v531 = vsel %vm528, %v530, %v526
        %v532 = vmul.f32 1.0, %v531
        %v533 = vrcp.pop %v457
        %v534 = vmul.f32 %v457, %v533
        %v535 = vsub.f32 1.0, %v534
        %v536 = vmul.f32 %v533, %v535
        %v537 = vadd.f32 %v533, %v536
        %vm538 = vweird.f32 %v457
        %vm539 = vweird.f32 %v533
        %vm540 = vmor %vm538, %vm539
        %v541 = vsel %vm540, %v533, %v537
        %v542 = vand.u32 2147483647, %v457
        %vm543 = vcmp.eq.f32.partialorder %v542, 8.507059e+37
        %v544 = vand.u32 %v457, 2147483648
        %v545 = vor.u32 1.1754944e-38, %v544
        %v546 = vsel %vm543, %v545, %v541
        %v547 = vmul.f32 1.0, %v546
        %v548 = vmul.f32 %v428, %v472
        %v549 = vmul.f32 %v429, %v487
        %v550 = vmul.f32 %v430, %v502
        %v551 = vmul.f32 %v431, %v517
        %v552 = vmul.f32 %v432, %v532
        %v553 = vmul.f32 %v433, %v547
        %554 = vst [vmem:[%s207] sm:$0xff] %v548
        %s555 = scalar_lea.vmem %s207, 8 [#allocation6]
        %556 = vst [vmem:[%s555] sm:$0xff] %v549
        %s557 = scalar_lea.vmem %s207, 16 [#allocation6]
        %558 = vst [vmem:[%s557] sm:$0xff] %v550
        %s559 = scalar_lea.vmem %s207, 24 [#allocation6]
        %560 = vst [vmem:[%s559] sm:$0xff] %v551
        %s561 = scalar_lea.vmem %s207, 32 [#allocation6]
        %562 = vst [vmem:[%s561] sm:$0xff] %v552
        %s563 = scalar_lea.vmem %s207, 40 [#allocation6]
        %564 = vst [vmem:[%s563] sm:$0xff] %v553
        %s565 = sand.u32 %s112, 1
        %s566 = scalar_lea.sflag [#allocation5], %s565
        %s567 = sand.u32 %s112, 1
        %s568 = smul.addr %s567, 48
        %s569 = scalar_lea.vmem [#allocation6], %s568
        // Predicated region
        $region37: #{tpu_custom_call.1} parent=31 // pred_check
          %p570 = pneg %p122
        $region38: #{tpu_custom_call.1} parent=31 // pred_check_branch
          %572 = sbr.rel (%p570) target = $region40
        $region39: #{tpu_custom_call.1} parent=31 // pred_region
          %574 = vsyncadd %s566, 0
          %s575 = smul.addr %s24, 6
          %s576 = sadd.s32 %s25, %s575
          %s577 = smul.addr %s576, 8
          %s578 = scalar_lea.hbm %s3, %s577
          %s579 = sshll.u32 %s569, 4
          %s580 = int_to_ptr.vmem [resolvable:$true] %s579
          %s581 = sshll.u32 %s578, 4
          %s582 = int_to_ptr.hbm [resolvable:$true] %s581
          %587 = dma.vmem_to_hbm [thread:$0]  %s580, 768, %s582, %s566, 128, 128, 8
        $region40: #{tpu_custom_call.1} parent=31 // pred_fallthru
          _
      $region32: #{tpu_custom_call.1} parent=5 // pred_fallthru
        _
      %p588 = scmp.le.s32.totalorder 2, %s15
      // Predicated region
      $region41: #{tpu_custom_call.1} parent=5 // pred_check
        %p589 = pneg %p588
      $region42: #{tpu_custom_call.1} parent=5 // pred_check_branch
        %591 = sbr.rel (%p589) target = $region44
      $region43: #{tpu_custom_call.1} parent=5 // pred_region
        %s592 = ssub.s32 %s15, 2
        // Predicated region
        $region45: #{tpu_custom_call.1} parent=43 // pred_check
          %p593 = pneg %p128
        $region46: #{tpu_custom_call.1} parent=43 // pred_check_branch
          %595 = sbr.rel (%p593) target = $region48
        $region47: #{tpu_custom_call.1} parent=43 // pred_region
          %s596 = sand.u32 %s113, 1
          %s597 = scalar_lea.sflag [#allocation5], %s596
          %s598 = sand.u32 %s113, 1
          %s599 = smul.addr %s598, 48
          %s600 = scalar_lea.vmem [#allocation6], %s599
          %602 = dma.done %s597, 768
        $region48: #{tpu_custom_call.1} parent=43 // pred_fallthru
          _
      $region44: #{tpu_custom_call.1} parent=5 // pred_fallthru
        _
    $region6: #{tpu_custom_call.1} parent=1 // loop_footer
      %s19 = sadd.s32 1, %s15
    $region7: #{tpu_custom_call.1} parent=1 // loop_footer_branch
      %14 = sbr.rel target = $region3
    $region8: #{tpu_custom_call.1} parent=1 // loop_exit
      _
    %603 = vsyncpa [#allocation4], 1
    %s604 = scalar_lea.sflag [#allocation4], 1
    %605 = vsyncpa %s604, 1
    %606 = vsyncpa [#allocation5], 1
    %s607 = scalar_lea.sflag [#allocation5], 1
    %608 = vsyncpa %s607, 1

</llo_original>
